<compile_context>
chip_gen: v7x
topology: tpu7x:2x2x1
jax: 0.10.0
libtpu: 0.0.40
codegen_flags: <defaults>
</compile_context>

<pallas_src>
import functools

import jax
import jax.numpy as jnp
from jax.experimental import pallas as pl
from jax.experimental.pallas import tpu as pltpu


def _round_up(x, m):
    return (x + m - 1) // m * m


def mlp_kernel(x_ref, w_ref, b_ref, wo_ref, bo_ref, o_ref, x_scr):
    # x_ref:  (Bp, D)      f32   (constant block -> loaded once)
    # w_ref:  (1, D, D)    bf16  (streamed per layer, double-buffered)
    # b_ref:  (1, 1, D)    f32   (streamed per layer)
    # wo_ref: (D, Vp)      bf16  (constant block -> loaded once)
    # bo_ref: (1, Vp)      f32   (constant block)
    # o_ref:  (Bp, Vp)     f32   (written on last grid step only)
    # x_scr:  (Bp, D)      f32   persistent activation scratch
    l = pl.program_id(0)

    @pl.when(l == 0)
    def _():
        x_scr[...] = x_ref[...]

    x = x_scr[...]
    # Residual MLP layer: x = x + relu(x @ W + b), f32 accumulation on the MXU.
    h = jnp.dot(x.astype(jnp.bfloat16), w_ref[0],
                preferred_element_type=jnp.float32) + b_ref[0]
    x = x + jnp.maximum(h, 0.0)
    x_scr[...] = x

    @pl.when(l == pl.num_programs(0) - 1)
    def _():
        o_ref[...] = (
            jnp.dot(x.astype(jnp.bfloat16), wo_ref[...],
                    preferred_element_type=jnp.float32)
            + bo_ref[...]
        )


@functools.partial(jax.jit, static_argnames=())
def model_forward(tokens, params):
    """tokens: (B, T) int32. Returns logits (B, vocab) float32."""
    tok_emb = params["token_embed"]        # (vocab, H)        f32
    w_stack = params["layer_w"]            # (L, D, D)         bf16 (pre-transposed: x @ w)
    b_stack = params["layer_b"]            # (L, 1, D)         f32
    wo = params["out_w"]                   # (D, V)            bf16 (pre-transposed)
    bo = params["out_b"]                   # (1, V)            f32

    B, T = tokens.shape
    H = tok_emb.shape[1]
    D = T * H
    L = w_stack.shape[0]
    V = wo.shape[1]

    # Glue: embedding lookup + flatten (b t c -> b (t c)).
    x = jnp.take(tok_emb, tokens.reshape(-1), axis=0).reshape(B, D)

    # Pad batch to sublane multiple and vocab to lane multiple (lane-dense
    # output stores); padding is sliced off on return.
    Bp = _round_up(max(B, 8), 8)
    Vp = _round_up(max(V, 128), 128)
    x_p = jnp.pad(x, ((0, Bp - B), (0, 0)))
    wo_p = jnp.pad(wo, ((0, 0), (0, Vp - V)))
    bo_p = jnp.pad(bo, ((0, 0), (0, Vp - V)))

    cost = pl.CostEstimate(
        flops=2 * Bp * D * D * L + 2 * Bp * D * Vp,
        transcendentals=0,
        bytes_accessed=(2 * L * D * D        # bf16 layer weights (the roofline)
                        + 4 * L * D          # f32 biases
                        + 2 * D * Vp         # bf16 out-proj weights
                        + 4 * Bp * D         # f32 activations in
                        + 4 * Bp * Vp),      # f32 logits out
    )

    out_p = pl.pallas_call(
        mlp_kernel,
        out_shape=jax.ShapeDtypeStruct((Bp, Vp), jnp.float32),
        grid_spec=pltpu.PrefetchScalarGridSpec(
            num_scalar_prefetch=0,
            grid=(L,),
            in_specs=[
                pl.BlockSpec((Bp, D), lambda l: (0, 0)),      # x (resident)
                pl.BlockSpec((1, D, D), lambda l: (l, 0, 0)), # layer weight (streamed)
                pl.BlockSpec((1, 1, D), lambda l: (l, 0, 0)), # layer bias (streamed)
                pl.BlockSpec((D, Vp), lambda l: (0, 0)),      # out_proj weight (resident)
                pl.BlockSpec((1, Vp), lambda l: (0, 0)),      # out_proj bias (resident)
            ],
            out_specs=pl.BlockSpec((Bp, Vp), lambda l: (0, 0)),
            scratch_shapes=[pltpu.VMEM((Bp, D), jnp.float32)],
        ),
        compiler_params=pltpu.CompilerParams(
            dimension_semantics=("arbitrary",),   # layers are sequential
            vmem_limit_bytes=64 * 1024 * 1024,    # headroom for bigger D on v5e/v6e
        ),
        cost_estimate=cost,
    )(x_p, w_stack, b_stack, wo_p, bo_p)

    return out_p[:B, :V]


def reference_forward(tokens, params):
    # Same math as the kernel (bf16 weights, bf16 matmul inputs, f32 accum),
    # expressed in plain JAX.
    tok_emb = params["token_embed"]
    B, T = tokens.shape
    H = tok_emb.shape[1]
    x = jnp.take(tok_emb, tokens.reshape(-1), axis=0).reshape(B, T * H)
    for l in range(params["layer_w"].shape[0]):
        h = jnp.dot(x.astype(jnp.bfloat16), params["layer_w"][l],
                    preferred_element_type=jnp.float32) + params["layer_b"][l]
        x = x + jnp.maximum(h, 0.0)
    return (jnp.dot(x.astype(jnp.bfloat16), params["out_w"],
                    preferred_element_type=jnp.float32) + params["out_b"])


def init_params(key, vocab_size, context_size, hidden_dim, layers):
    D = context_size * hidden_dim
    ks = jax.random.split(key, 5)
    scale_lin = 1.0 / jnp.sqrt(D)
    params = {
        "token_embed": jax.random.normal(
            ks[0], (vocab_size, hidden_dim), jnp.float32),
        # stored as (in, out) so kernel uses x @ W directly (== torch x @ W.T);
        # weights kept bf16 (streamed dtype), biases/activations f32.
        "layer_w": (scale_lin * jax.random.normal(
            ks[1], (layers, D, D), jnp.float32)).astype(jnp.bfloat16),
        "layer_b": 0.01 * jax.random.normal(
            ks[2], (layers, 1, D), jnp.float32),
        "out_w": (scale_lin * jax.random.normal(
            ks[3], (D, vocab_size), jnp.float32)).astype(jnp.bfloat16),
        "out_b": 0.01 * jax.random.normal(
            ks[4], (1, vocab_size), jnp.float32),
    }
    return params


if __name__ == "__main__":
    # Small shapes consistent with the module's forward.
    vocab_size = 64
    context_size = 8
    hidden_dim = 32
    layers = 4
    batch = 2

    key = jax.random.PRNGKey(0)
    k_tok, k_par = jax.random.split(key)
    params = init_params(k_par, vocab_size, context_size, hidden_dim, layers)
    tokens = jax.random.randint(
        k_tok, (batch, context_size), 0, vocab_size, dtype=jnp.int32)

    out = model_forward(tokens, params)
    out = jax.block_until_ready(out)

    ref = reference_forward(tokens, params)
    assert out.shape == (batch, vocab_size)
    assert jnp.allclose(out, ref, atol=1e-2, rtol=1e-2), "mismatch vs reference"

    print("KERNEL_OK")
</pallas_src>

<mosaic_0001>
module attributes {stable_mosaic.version = 11 : i64} {
  func.func @mlp_kernel(%arg0: i32, %arg1: memref<8x256xf32, #tpu.memory_space<vmem>>, %arg2: memref<1x256x256xbf16, #tpu.memory_space<vmem>>, %arg3: memref<1x1x256xf32, #tpu.memory_space<vmem>>, %arg4: memref<256x128xbf16, #tpu.memory_space<vmem>>, %arg5: memref<1x128xf32, #tpu.memory_space<vmem>>, %arg6: memref<8x128xf32, #tpu.memory_space<vmem>>, %arg7: memref<8x256xf32, #tpu.memory_space<vmem>>) attributes {dimension_semantics = [#tpu.dimension_semantics<arbitrary>], iteration_bounds = array<i64: 4>, scalar_prefetch = 0 : i64, scratch_operands = 1 : i64, tpu.core_type = #tpu.core_type<tc>, window_params = [{pipeline_mode = #tpu.pipeline_mode<synchronous>, transform_indices = @transform_0, window_bounds = array<i64: 8, 256>}, {transform_indices = @transform_1, window_bounds = array<i64: 1, 256, 256>}, {transform_indices = @transform_2, window_bounds = array<i64: 1, 1, 256>}, {pipeline_mode = #tpu.pipeline_mode<synchronous>, transform_indices = @transform_3, window_bounds = array<i64: 256, 128>}, {pipeline_mode = #tpu.pipeline_mode<synchronous>, transform_indices = @transform_4, window_bounds = array<i64: 1, 128>}, {pipeline_mode = #tpu.pipeline_mode<synchronous>, transform_indices = @transform_5, window_bounds = array<i64: 8, 128>}]} {
    %c0_i32 = arith.constant 0 : i32
    %0 = arith.cmpi eq, %arg0, %c0_i32 : i32
    %1 = arith.extui %0 : i1 to i32
    %c0_i32_0 = arith.constant 0 : i32
    %2 = arith.cmpi ne, %1, %c0_i32_0 : i32
    scf.if %2 {
      %c0_12 = arith.constant 0 : index
      %c0_13 = arith.constant 0 : index
      %19 = vector.load %arg1[%c0_12, %c0_13] : memref<8x256xf32, #tpu.memory_space<vmem>>, vector<8x256xf32>
      %c0_14 = arith.constant 0 : index
      %c0_15 = arith.constant 0 : index
      %20 = vector.load %arg7[%c0_14, %c0_15] : memref<8x256xf32, #tpu.memory_space<vmem>>, vector<8x256xf32>
      tpu.vector_store %arg7[%c0_14, %c0_15], %19 {strides = array<i32>} : memref<8x256xf32, #tpu.memory_space<vmem>>, vector<8x256xf32>,
    } else {
    }
    %c0 = arith.constant 0 : index
    %c0_1 = arith.constant 0 : index
    %3 = vector.load %arg7[%c0, %c0_1] : memref<8x256xf32, #tpu.memory_space<vmem>>, vector<8x256xf32>
    %4 = arith.truncf %3 : vector<8x256xf32> to vector<8x256xbf16>
    %c0_2 = arith.constant 0 : index
    %c0_3 = arith.constant 0 : index
    %c0_4 = arith.constant 0 : index
    %5 = vector.load %arg2[%c0_2, %c0_3, %c0_4] : memref<1x256x256xbf16, #tpu.memory_space<vmem>>, vector<1x256x256xbf16>
    %6 = vector.shape_cast %5 : vector<1x256x256xbf16> to vector<256x256xbf16>
    %cst = arith.constant dense<0.000000e+00> : vector<8x256xf32>
    %7 = tpu.matmul %4, %6, %cst {dimension_numbers = #tpu.dot_dimension_numbers<[1], [0], [0], [1], [0, 0, 1, 1], [], []>} : vector<8x256xbf16>, vector<256x256xbf16>, vector<8x256xf32> -> vector<8x256xf32>
    %c0_5 = arith.constant 0 : index
    %c0_6 = arith.constant 0 : index
    %c0_7 = arith.constant 0 : index
    %8 = vector.load %arg3[%c0_5, %c0_6, %c0_7] : memref<1x1x256xf32, #tpu.memory_space<vmem>>, vector<1x1x256xf32>
    %9 = vector.shape_cast %8 : vector<1x1x256xf32> to vector<1x256xf32>
    %10 = vector.broadcast %9 : vector<1x256xf32> to vector<8x256xf32>
    %11 = arith.addf %7, %10 : vector<8x256xf32>
    %cst_8 = arith.constant 0.000000e+00 : f32
    %12 = vector.broadcast %cst_8 : f32 to vector<8x256xf32>
    %13 = arith.maximumf %11, %12 : vector<8x256xf32>
    %14 = arith.addf %3, %13 : vector<8x256xf32>
    %c0_9 = arith.constant 0 : index
    %c0_10 = arith.constant 0 : index
    %15 = vector.load %arg7[%c0_9, %c0_10] : memref<8x256xf32, #tpu.memory_space<vmem>>, vector<8x256xf32>
    tpu.vector_store %arg7[%c0_9, %c0_10], %14 {strides = array<i32>} : memref<8x256xf32, #tpu.memory_space<vmem>>, vector<8x256xf32>,
    %c3_i32 = arith.constant 3 : i32
    %16 = arith.cmpi eq, %arg0, %c3_i32 : i32
    %17 = arith.extui %16 : i1 to i32
    %c0_i32_11 = arith.constant 0 : i32
    %18 = arith.cmpi ne, %17, %c0_i32_11 : i32
    scf.if %18 {
      %19 = arith.truncf %14 : vector<8x256xf32> to vector<8x256xbf16>
      %c0_12 = arith.constant 0 : index
      %c0_13 = arith.constant 0 : index
      %20 = vector.load %arg4[%c0_12, %c0_13] : memref<256x128xbf16, #tpu.memory_space<vmem>>, vector<256x128xbf16>
      %cst_14 = arith.constant dense<0.000000e+00> : vector<8x128xf32>
      %21 = tpu.matmul %19, %20, %cst_14 {dimension_numbers = #tpu.dot_dimension_numbers<[1], [0], [0], [1], [0, 0, 1, 1], [], []>} : vector<8x256xbf16>, vector<256x128xbf16>, vector<8x128xf32> -> vector<8x128xf32>
      %c0_15 = arith.constant 0 : index
      %c0_16 = arith.constant 0 : index
      %22 = vector.load %arg5[%c0_15, %c0_16] : memref<1x128xf32, #tpu.memory_space<vmem>>, vector<1x128xf32>
      %23 = vector.broadcast %22 : vector<1x128xf32> to vector<8x128xf32>
      %24 = arith.addf %21, %23 : vector<8x128xf32>
      %c0_17 = arith.constant 0 : index
      %c0_18 = arith.constant 0 : index
      %25 = vector.load %arg6[%c0_17, %c0_18] : memref<8x128xf32, #tpu.memory_space<vmem>>, vector<8x128xf32>
      tpu.vector_store %arg6[%c0_17, %c0_18], %24 {strides = array<i32>} : memref<8x128xf32, #tpu.memory_space<vmem>>, vector<8x128xf32>,
    } else {
    }
    return
  }
  func.func @transform_0(%arg0: i32) -> (i32, i32) {
    %c0_i32 = arith.constant 0 : i32
    %c0_i32_0 = arith.constant 0 : i32
    %c0_i32_1 = arith.constant 0 : i32
    return %c0_i32, %c0_i32_0 : i32, i32
  }
  func.func @transform_1(%arg0: i32) -> (i32, i32, i32) {
    %c0_i32 = arith.constant 0 : i32
    %c0_i32_0 = arith.constant 0 : i32
    %c0_i32_1 = arith.constant 0 : i32
    return %arg0, %c0_i32, %c0_i32_0 : i32, i32, i32
  }
  func.func @transform_2(%arg0: i32) -> (i32, i32, i32) {
    %c0_i32 = arith.constant 0 : i32
    %c0_i32_0 = arith.constant 0 : i32
    %c0_i32_1 = arith.constant 0 : i32
    return %arg0, %c0_i32, %c0_i32_0 : i32, i32, i32
  }
  func.func @transform_3(%arg0: i32) -> (i32, i32) {
    %c0_i32 = arith.constant 0 : i32
    %c0_i32_0 = arith.constant 0 : i32
    %c0_i32_1 = arith.constant 0 : i32
    return %c0_i32, %c0_i32_0 : i32, i32
  }
  func.func @transform_4(%arg0: i32) -> (i32, i32) {
    %c0_i32 = arith.constant 0 : i32
    %c0_i32_0 = arith.constant 0 : i32
    %c0_i32_1 = arith.constant 0 : i32
    return %c0_i32, %c0_i32_0 : i32, i32
  }
  func.func @transform_5(%arg0: i32) -> (i32, i32) {
    %c0_i32 = arith.constant 0 : i32
    %c0_i32_0 = arith.constant 0 : i32
    %c0_i32_1 = arith.constant 0 : i32
    return %c0_i32, %c0_i32_0 : i32, i32
  }
}

</mosaic_0001>

<llo_original>
// kernel: model_forward.1
$region0: #{model_forward.1}
  #allocation0 [shape = 'u32[]', space=smem, size = 0x4, offset = 0x4, fixed_abs, tag = 'smem constant byte address 0x4 - core index']
  #allocation1 [shape = 'u32[144,128]{1,0:T(1,128)}', space=vmem, size = 0x12000, scoped, tag = 'internal scratch']
  #allocation2 [shape = 'f32[8,256]{1,0:T(8,128)}', space=vmem, size = 0x2000, scoped, tag = 'scratch operand']
  %s0 = inlined_call_operand.hbm [shape: f32[8,256], index: 0, kind: input, shape index: {}]
  %s1 = inlined_call_operand.hbm [shape: bf16[4,256,256], index: 1, kind: input, shape index: {}]
  %s2 = inlined_call_operand.hbm [shape: f32[4,1,256], index: 2, kind: input, shape index: {}]
  %s3 = inlined_call_operand.hbm [shape: bf16[256,128], index: 3, kind: input, shape index: {}]
  %s4 = inlined_call_operand.hbm [shape: f32[1,128], index: 4, kind: input, shape index: {}]
  %s5 = inlined_call_operand.hbm [shape: f32[8,128], index: 5, kind: output, shape index: {}]
  %s6 = sld [smem:[#allocation0]]
  $region81: #{model_forward.1} parent=0
    _
  %s8 = ssub.s32 1, %s6
  %s9 = scalar_select 0, %s8, %s6
  $region1: #{model_forward.1} parent=0
    #allocation3 [shape = 'u8[8192]{0}', space=vmem, size = 0x2000, scoped, tag = 'input window, operand 0, single buffered']
    #allocation4 [shape = 's32[2]{0}', space=sflag, size = 0x8, scoped, tag = 'scoped memory for model_forward.1']
    #allocation5 [shape = 's32[2]{0}', space=sflag, size = 0x8, scoped, tag = 'scoped memory for model_forward.1']
    #allocation6 [shape = 'u8[262144]{0}', space=vmem, size = 0x40000, scoped, tag = 'input window, operand 1']
    #allocation7 [shape = 's32[2]{0}', space=sflag, size = 0x8, scoped, tag = 'scoped memory for model_forward.1']
    #allocation8 [shape = 'u8[2048]{0}', space=vmem, size = 0x800, scoped, tag = 'input window, operand 2']
    #allocation9 [shape = 'u8[65536]{0}', space=vmem, size = 0x10000, scoped, tag = 'input window, operand 3, single buffered']
    #allocation10 [shape = 's32[1]{0}', space=sflag, size = 0x4, scoped, tag = 'scoped memory for model_forward.1']
    #allocation11 [shape = 'u8[512]{0}', space=vmem, size = 0x400, scoped, tag = 'input window, operand 4, single buffered']
    #allocation12 [shape = 'u8[4096]{0}', space=vmem, size = 0x1000, scoped, tag = 'output window, operand 0, single buffered']
    %10 = vsyncpa [#allocation4], 0
    %11 = vsyncpa [#allocation7], 0
    %s12 = scalar_lea.sflag [#allocation7], 1
    %13 = vsyncpa %s12, 0
    %14 = vsyncpa [#allocation10], 0
    %15 = vsyncpa [#allocation5], 0
    loop: start=0, step=1, limit=6
    $region2: #{model_forward.1} parent=1 // loop_pre_header
      _
    $region3: #{model_forward.1} parent=1 // loop_header
      %s17 = sphi 0, %s21
      %p18 = scmp.ge.s32.totalorder %s17, 6
      %s25 = sphi 0, %s25
      %s27 = sphi 0, %s25
      %s28 = sphi 0, %s27
      %s42 = sphi 0, %s28
      %s48 = sphi 0, %s50
      %s51 = sphi 0, %s48
      %s52 = sphi 0, %s51
      %s68 = sphi 0, %s52
      %s74 = sphi 0, %s76
      %s77 = sphi 0, %s74
      %s78 = sphi 0, %s77
      %s94 = sphi 0, %s78
      %s98 = sphi 0, %s98
      %s100 = sphi 0, %s98
      %s101 = sphi 0, %s100
      %s115 = sphi 0, %s101
      %s119 = sphi 0, %s119
      %s121 = sphi 0, %s119
      %s122 = sphi 0, %s121
      %s136 = sphi 0, %s122
      %s140 = sphi 0, %s140
      %s142 = sphi 0, %s140
      %s143 = sphi 0, %s142
      %s157 = sphi 0, %s143
    $region4: #{model_forward.1} parent=1 // loop_header_branch
      %20 = sbr.rel (%p18) target = $region8
    $region5: #{model_forward.1} parent=1 // loop_body
      %s22 = ssub.s32 %s17, 1
      %s23 = ssub.s32 %s17, 2
      %s24 = sadd.s32 %s17, 1
      %s26 = sadd.s32 %s25, 1
      %p29 = scmp.eq.s32.totalorder %s17, 3
      %p30 = scmp.ne.s32.totalorder %s25, %s27
      %p31 = scmp.eq.s32.totalorder %s17, 0
      %p32 = por %p30, %p31
      %p33 = scmp.ne.s32.totalorder %s25, %s27
      %p34 = scmp.eq.s32.totalorder %s22, 3
      %p35 = por %p33, %p34
      %p36 = scmp.ne.s32.totalorder %s27, %s28
      %p37 = scmp.eq.s32.totalorder %s22, 0
      %p38 = por %p36, %p37
      %p39 = scmp.ne.s32.totalorder %s27, %s28
      %p40 = scmp.eq.s32.totalorder %s23, 3
      %p41 = por %p39, %p40
      %p43 = scmp.ne.s32.totalorder %s28, %s42
      %p44 = scmp.eq.s32.totalorder %s23, 0
      %p45 = por %p43, %p44
      %s46 = ssub.s32 %s17, %s24
      %p47 = scmp.eq.s32.totalorder %s46, 0
      %s49 = sadd.s32 %s48, 1
      %s50 = scalar_select %p47, %s48, %s49
      %p53 = pneg %p47
      %p54 = scmp.eq.s32.totalorder %s17, 3
      %p55 = por %p53, %p54
      %p56 = scmp.ne.s32.totalorder %s48, %s51
      %p57 = scmp.eq.s32.totalorder %s17, 0
      %p58 = por %p56, %p57
      %p59 = scmp.ne.s32.totalorder %s48, %s51
      %p60 = scmp.eq.s32.totalorder %s22, 3
      %p61 = por %p59, %p60
      %p62 = scmp.ne.s32.totalorder %s51, %s52
      %p63 = scmp.eq.s32.totalorder %s22, 0
      %p64 = por %p62, %p63
      %p65 = scmp.ne.s32.totalorder %s51, %s52
      %p66 = scmp.eq.s32.totalorder %s23, 3
      %p67 = por %p65, %p66
      %p69 = scmp.ne.s32.totalorder %s52, %s68
      %p70 = scmp.eq.s32.totalorder %s23, 0
      %p71 = por %p69, %p70
      %s72 = ssub.s32 %s17, %s24
      %p73 = scmp.eq.s32.totalorder %s72, 0
      %s75 = sadd.s32 %s74, 1
      %s76 = scalar_select %p73, %s74, %s75
      %p79 = pneg %p73
      %p80 = scmp.eq.s32.totalorder %s17, 3
      %p81 = por %p79, %p80
      %p82 = scmp.ne.s32.totalorder %s74, %s77
      %p83 = scmp.eq.s32.totalorder %s17, 0
      %p84 = por %p82, %p83
      %p85 = scmp.ne.s32.totalorder %s74, %s77
      %p86 = scmp.eq.s32.totalorder %s22, 3
      %p87 = por %p85, %p86
      %p88 = scmp.ne.s32.totalorder %s77, %s78
      %p89 = scmp.eq.s32.totalorder %s22, 0
      %p90 = por %p88, %p89
      %p91 = scmp.ne.s32.totalorder %s77, %s78
      %p92 = scmp.eq.s32.totalorder %s23, 3
      %p93 = por %p91, %p92
      %p95 = scmp.ne.s32.totalorder %s78, %s94
      %p96 = scmp.eq.s32.totalorder %s23, 0
      %p97 = por %p95, %p96
      %s99 = sadd.s32 %s98, 1
      %p102 = scmp.eq.s32.totalorder %s17, 3
      %p103 = scmp.ne.s32.totalorder %s98, %s100
      %p104 = scmp.eq.s32.totalorder %s17, 0
      %p105 = por %p103, %p104
      %p106 = scmp.ne.s32.totalorder %s98, %s100
      %p107 = scmp.eq.s32.totalorder %s22, 3
      %p108 = por %p106, %p107
      %p109 = scmp.ne.s32.totalorder %s100, %s101
      %p110 = scmp.eq.s32.totalorder %s22, 0
      %p111 = por %p109, %p110
      %p112 = scmp.ne.s32.totalorder %s100, %s101
      %p113 = scmp.eq.s32.totalorder %s23, 3
      %p114 = por %p112, %p113
      %p116 = scmp.ne.s32.totalorder %s101, %s115
      %p117 = scmp.eq.s32.totalorder %s23, 0
      %p118 = por %p116, %p117
      %s120 = sadd.s32 %s119, 1
      %p123 = scmp.eq.s32.totalorder %s17, 3
      %p124 = scmp.ne.s32.totalorder %s119, %s121
      %p125 = scmp.eq.s32.totalorder %s17, 0
      %p126 = por %p124, %p125
      %p127 = scmp.ne.s32.totalorder %s119, %s121
      %p128 = scmp.eq.s32.totalorder %s22, 3
      %p129 = por %p127, %p128
      %p130 = scmp.ne.s32.totalorder %s121, %s122
      %p131 = scmp.eq.s32.totalorder %s22, 0
      %p132 = por %p130, %p131
      %p133 = scmp.ne.s32.totalorder %s121, %s122
      %p134 = scmp.eq.s32.totalorder %s23, 3
      %p135 = por %p133, %p134
      %p137 = scmp.ne.s32.totalorder %s122, %s136
      %p138 = scmp.eq.s32.totalorder %s23, 0
      %p139 = por %p137, %p138
      %s141 = sadd.s32 %s140, 1
      %p144 = scmp.eq.s32.totalorder %s17, 3
      %p145 = scmp.ne.s32.totalorder %s140, %s142
      %p146 = scmp.eq.s32.totalorder %s17, 0
      %p147 = por %p145, %p146
      %p148 = scmp.ne.s32.totalorder %s140, %s142
      %p149 = scmp.eq.s32.totalorder %s22, 3
      %p150 = por %p148, %p149
      %p151 = scmp.ne.s32.totalorder %s142, %s143
      %p152 = scmp.eq.s32.totalorder %s22, 0
      %p153 = por %p151, %p152
      %p154 = scmp.ne.s32.totalorder %s142, %s143
      %p155 = scmp.eq.s32.totalorder %s23, 3
      %p156 = por %p154, %p155
      %p158 = scmp.ne.s32.totalorder %s143, %s157
      %p159 = scmp.eq.s32.totalorder %s23, 0
      %p160 = por %p158, %p159
      %p161 = scmp.le.s32.totalorder 1, %s17
      %p162 = scmp.lt.s32.totalorder %s17, 5
      %p163 = pnand %p161, %p162
      %p164 = pneg %p163
      // Predicated region
      $region9: #{model_forward.1} parent=5 // pred_check
        _
      $region10: #{model_forward.1} parent=5 // pred_check_branch
        %166 = sbr.rel (%p163) target = $region12
      $region11: #{model_forward.1} parent=5 // pred_region
        %s167 = ssub.s32 %s17, 1
        // Predicated region
        $region13: #{model_forward.1} parent=11 // pred_check
          %p168 = pneg %p38
        $region14: #{model_forward.1} parent=11 // pred_check_branch
          %170 = sbr.rel (%p168) target = $region16
        $region15: #{model_forward.1} parent=11 // pred_region
          %s172 = ssub.s32 256, 256
          %173 = vsyncadd [#allocation4], %s172
          %s175 = sshll.u32 [#allocation3], 4
          %s176 = int_to_ptr.vmem [resolvable:$true] %s175
          %178 = dma.hbm_to_vmem [thread:$0]  %s0, 256, %s176, [#allocation4]
        $region16: #{model_forward.1} parent=11 // pred_fallthru
          _
        // Predicated region
        $region17: #{model_forward.1} parent=11 // pred_check
          %p179 = pneg %p111
        $region18: #{model_forward.1} parent=11 // pred_check_branch
          %181 = sbr.rel (%p179) target = $region20
        $region19: #{model_forward.1} parent=11 // pred_region
          %s183 = ssub.s32 2048, 2048
          %184 = vsyncadd [#allocation10], %s183
          %s185 = sshll.u32 [#allocation9], 4
          %s186 = int_to_ptr.vmem [resolvable:$true] %s185
          %191 = dma.hbm_to_vmem [thread:$0]  %s3, 2048, %s186, [#allocation10], 64, 64, 4
        $region20: #{model_forward.1} parent=11 // pred_fallthru
          _
        // Predicated region
        $region21: #{model_forward.1} parent=11 // pred_check
          %p192 = pneg %p132
        $region22: #{model_forward.1} parent=11 // pred_check_branch
          %194 = sbr.rel (%p192) target = $region24
        $region23: #{model_forward.1} parent=11 // pred_region
          %s196 = ssub.s32 16, 16
          %197 = vsyncadd [#allocation10], %s196
          %s199 = sshll.u32 [#allocation11], 4
          %s200 = int_to_ptr.vmem [resolvable:$true] %s199
          %202 = dma.hbm_to_vmem [thread:$0]  %s4, 16, %s200, [#allocation10]
        $region24: #{model_forward.1} parent=11 // pred_fallthru
          _
      $region12: #{model_forward.1} parent=5 // pred_fallthru
        _
      %p203 = scmp.lt.s32.totalorder %s17, 4
      // Predicated region
      $region25: #{model_forward.1} parent=5 // pred_check
        %p204 = pneg %p203
      $region26: #{model_forward.1} parent=5 // pred_check_branch
        %206 = sbr.rel (%p204) target = $region28
      $region27: #{model_forward.1} parent=5 // pred_region
        // Predicated region
        $region29: #{model_forward.1} parent=27 // pred_check
          %p207 = pneg %p58
        $region30: #{model_forward.1} parent=27 // pred_check_branch
          %209 = sbr.rel (%p207) target = $region32
        $region31: #{model_forward.1} parent=27 // pred_region
          %s210 = sand.u32 %s17, 1
          %s211 = scalar_lea.sflag [#allocation7], %s210
          %s212 = sand.u32 %s48, 1
          %s213 = smul.addr %s212, 256
          %s214 = scalar_lea.vmem [#allocation6], %s213
          %s216 = ssub.s32 4096, 4096
          %217 = vsyncadd %s211, %s216
          %s218 = smul.addr %s17, 64
          %s219 = smul.addr %s218, 64
          %s220 = scalar_lea.hbm %s1, %s219
          %s221 = sshll.u32 %s214, 4
          %s222 = int_to_ptr.vmem [resolvable:$true] %s221
          %227 = dma.hbm_to_vmem [thread:$0]  %s220, 4096, %s222, %s211, 128, 128, 8
        $region32: #{model_forward.1} parent=27 // pred_fallthru
          _
        // Predicated region
        $region33: #{model_forward.1} parent=27 // pred_check
          %p228 = pneg %p84
        $region34: #{model_forward.1} parent=27 // pred_check_branch
          %230 = sbr.rel (%p228) target = $region36
        $region35: #{model_forward.1} parent=27 // pred_region
          %s231 = sand.u32 %s17, 1
          %s232 = scalar_lea.sflag [#allocation7], %s231
          %s233 = sand.u32 %s74, 1
          %s234 = smul.addr %s233, 2
          %s235 = scalar_lea.vmem [#allocation8], %s234
          %s237 = ssub.s32 32, 32
          %238 = vsyncadd %s232, %s237
          %s239 = smul.addr %s17, 2
          %s240 = smul.addr %s239, 16
          %s241 = scalar_lea.hbm %s2, %s240
          %s243 = sshll.u32 %s235, 4
          %s244 = int_to_ptr.vmem [resolvable:$true] %s243
          %246 = dma.hbm_to_vmem [thread:$0]  %s241, 32, %s244, %s232
        $region36: #{model_forward.1} parent=27 // pred_fallthru
          _
      $region28: #{model_forward.1} parent=5 // pred_fallthru
        _
      %p247 = scmp.le.s32.totalorder 1, %s17
      %p248 = scmp.lt.s32.totalorder %s17, 5
      %p249 = pnand %p247, %p248
      %p250 = pneg %p249
      // Predicated region
      $region37: #{model_forward.1} parent=5 // pred_check
        _
      $region38: #{model_forward.1} parent=5 // pred_check_branch
        %252 = sbr.rel (%p249) target = $region40
      $region39: #{model_forward.1} parent=5 // pred_region
        %s253 = ssub.s32 %s17, 1
        // Predicated region
        $region41: #{model_forward.1} parent=39 // pred_check
          %p254 = pneg %p38
        $region42: #{model_forward.1} parent=39 // pred_check_branch
          %256 = sbr.rel (%p254) target = $region44
        $region43: #{model_forward.1} parent=39 // pred_region
          %257 = dma.done [#allocation4], 256
        $region44: #{model_forward.1} parent=39 // pred_fallthru
          _
        %s258 = sand.u32 %s22, 1
        %s259 = scalar_lea.sflag [#allocation7], %s258
        %s260 = sand.u32 %s51, 1
        %s261 = smul.addr %s260, 256
        %s262 = scalar_lea.vmem [#allocation6], %s261
        // Predicated region
        $region45: #{model_forward.1} parent=39 // pred_check
          %p263 = pneg %p64
        $region46: #{model_forward.1} parent=39 // pred_check_branch
          %265 = sbr.rel (%p263) target = $region48
        $region47: #{model_forward.1} parent=39 // pred_region
          %266 = dma.done %s259, 4096
        $region48: #{model_forward.1} parent=39 // pred_fallthru
          _
        %s267 = sand.u32 %s22, 1
        %s268 = scalar_lea.sflag [#allocation7], %s267
        %s269 = sand.u32 %s77, 1
        %s270 = smul.addr %s269, 2
        %s271 = scalar_lea.vmem [#allocation8], %s270
        // Predicated region
        $region49: #{model_forward.1} parent=39 // pred_check
          %p272 = pneg %p90
        $region50: #{model_forward.1} parent=39 // pred_check_branch
          %274 = sbr.rel (%p272) target = $region52
        $region51: #{model_forward.1} parent=39 // pred_region
          %275 = dma.done %s268, 32
        $region52: #{model_forward.1} parent=39 // pred_fallthru
          _
        // Predicated region
        $region53: #{model_forward.1} parent=39 // pred_check
          %p276 = pneg %p111
        $region54: #{model_forward.1} parent=39 // pred_check_branch
          %278 = sbr.rel (%p276) target = $region56
        $region55: #{model_forward.1} parent=39 // pred_region
          %279 = dma.done [#allocation10], 2048
        $region56: #{model_forward.1} parent=39 // pred_fallthru
          _
        // Predicated region
        $region57: #{model_forward.1} parent=39 // pred_check
          %p280 = pneg %p132
        $region58: #{model_forward.1} parent=39 // pred_check_branch
          %282 = sbr.rel (%p280) target = $region60
        $region59: #{model_forward.1} parent=39 // pred_region
          %283 = dma.done [#allocation10], 16
        $region60: #{model_forward.1} parent=39 // pred_fallthru
          _
        %p284 = pneg %p38
        %p285 = pneg %p35
        %s286 = sand.u32 %s22, 1
        %s287 = scalar_lea.sflag [#allocation7], %s286
        %s288 = sand.u32 %s51, 1
        %s289 = smul.addr %s288, 256
        %s290 = scalar_lea.vmem [#allocation6], %s289
        %p291 = pneg %p64
        %p292 = pneg %p61
        %s293 = sand.u32 %s22, 1
        %s294 = scalar_lea.sflag [#allocation7], %s293
        %s295 = sand.u32 %s77, 1
        %s296 = smul.addr %s295, 2
        %s297 = scalar_lea.vmem [#allocation8], %s296
        %p298 = pneg %p90
        %p299 = pneg %p87
        %p300 = pneg %p111
        %p301 = pneg %p108
        %p302 = pneg %p132
        %p303 = pneg %p129
        %p304 = pneg %p153
        %p305 = pneg %p150
        %p307 = scmp.eq.s32.totalorder %s22, 0
        // Predicated region
        $region61: #{model_forward.1} parent=39 // pred_check
          %p308 = pneg %p307
        $region62: #{model_forward.1} parent=39 // pred_check_branch
          %310 = sbr.rel (%p308) target = $region64
        $region63: #{model_forward.1} parent=39 // pred_region
          %v311 = vld [vmem:[#allocation3] sm:$0xff]
          %v312 = vld [vmem:[#allocation3 + $0x8] sm:$0xff]
          %313 = vst [vmem:[#allocation2] sm:$0xff] %v311
          %314 = vst [vmem:[#allocation2 + $0x8] sm:$0xff] %v312
        $region64: #{model_forward.1} parent=39 // pred_fallthru
          _
        %v315 = vld [vmem:[#allocation2] sm:$0xff]
        %v316 = vld [vmem:[#allocation2 + $0x8] sm:$0xff]
        %v317 = vpack.c.bf16 %v315, %v315
        %v318 = vpack.c.bf16 %v316, %v316
        %v319 = vld [vmem:[%s262] sm:$0xff]
        %v320 = vld [vmem:[%s262 + $0x8] sm:$0xff]
        %v321 = vld [vmem:[%s262 + $0x10] sm:$0xff]
        %v322 = vld [vmem:[%s262 + $0x18] sm:$0xff]
        %v323 = vld [vmem:[%s262 + $0x20] sm:$0xff]
        %v324 = vld [vmem:[%s262 + $0x28] sm:$0xff]
        %v325 = vld [vmem:[%s262 + $0x30] sm:$0xff]
        %v326 = vld [vmem:[%s262 + $0x38] sm:$0xff]
        %v327 = vld [vmem:[%s262 + $0x40] sm:$0xff]
        %v328 = vld [vmem:[%s262 + $0x48] sm:$0xff]
        %v329 = vld [vmem:[%s262 + $0x50] sm:$0xff]
        %v330 = vld [vmem:[%s262 + $0x58] sm:$0xff]
        %v331 = vld [vmem:[%s262 + $0x60] sm:$0xff]
        %v332 = vld [vmem:[%s262 + $0x68] sm:$0xff]
        %v333 = vld [vmem:[%s262 + $0x70] sm:$0xff]
        %v334 = vld [vmem:[%s262 + $0x78] sm:$0xff]
        %v335 = vld [vmem:[%s262 + $0x80] sm:$0xff]
        %v336 = vld [vmem:[%s262 + $0x88] sm:$0xff]
        %v337 = vld [vmem:[%s262 + $0x90] sm:$0xff]
        %v338 = vld [vmem:[%s262 + $0x98] sm:$0xff]
        %v339 = vld [vmem:[%s262 + $0xa0] sm:$0xff]
        %v340 = vld [vmem:[%s262 + $0xa8] sm:$0xff]
        %v341 = vld [vmem:[%s262 + $0xb0] sm:$0xff]
        %v342 = vld [vmem:[%s262 + $0xb8] sm:$0xff]
        %v343 = vld [vmem:[%s262 + $0xc0] sm:$0xff]
        %v344 = vld [vmem:[%s262 + $0xc8] sm:$0xff]
        %v345 = vld [vmem:[%s262 + $0xd0] sm:$0xff]
        %v346 = vld [vmem:[%s262 + $0xd8] sm:$0xff]
        %v347 = vld [vmem:[%s262 + $0xe0] sm:$0xff]
        %v348 = vld [vmem:[%s262 + $0xe8] sm:$0xff]
        %v349 = vld [vmem:[%s262 + $0xf0] sm:$0xff]
        %v350 = vld [vmem:[%s262 + $0xf8] sm:$0xff]
        %v351 = vld [vmem:[%s271] sm:$0x3]
        %v353 = vlaneseq
        %v354 = vshrl.u32 %v353, 7
        %v355 = vsub.s32 0, %v354
        %v356 = vrot.slane %v351, %v355
        %v357 = vlaneseq
        %v358 = vshrl.u32 %v357, 7
        %v359 = vsub.s32 1, %v358
        %v360 = vrot.slane %v351, %v359
        %v395 = vunpack.c.l.b16 %v319
        %v396 = vunpack.c.h.b16 %v319
        %v397 = vunpack.c.l.b16 %v320
        %v398 = vunpack.c.h.b16 %v320
        %v399 = vunpack.c.l.b16 %v321
        %v400 = vunpack.c.h.b16 %v321
        %v401 = vunpack.c.l.b16 %v322
        %v402 = vunpack.c.h.b16 %v322
        %v403 = vunpack.c.l.b16 %v323
        %v404 = vunpack.c.h.b16 %v323
        %v405 = vunpack.c.l.b16 %v324
        %v406 = vunpack.c.h.b16 %v324
        %v407 = vunpack.c.l.b16 %v325
        %v408 = vunpack.c.h.b16 %v325
        %v409 = vunpack.c.l.b16 %v326
        %v410 = vunpack.c.h.b16 %v326
        %v411 = vunpack.c.l.b16 %v327
        %v412 = vunpack.c.h.b16 %v327
        %v413 = vunpack.c.l.b16 %v328
        %v414 = vunpack.c.h.b16 %v328
        %v415 = vunpack.c.l.b16 %v329
        %v416 = vunpack.c.h.b16 %v329
        %v417 = vunpack.c.l.b16 %v330
        %v418 = vunpack.c.h.b16 %v330
        %v419 = vunpack.c.l.b16 %v331
        %v420 = vunpack.c.h.b16 %v331
        %v421 = vunpack.c.l.b16 %v332
        %v422 = vunpack.c.h.b16 %v332
        %v423 = vunpack.c.l.b16 %v333
        %v424 = vunpack.c.h.b16 %v333
        %v425 = vunpack.c.l.b16 %v334
        %v426 = vunpack.c.h.b16 %v334
        %v427 = vunpack.c.l.b16 %v335
        %v428 = vunpack.c.h.b16 %v335
        %v429 = vunpack.c.l.b16 %v336
        %v430 = vunpack.c.h.b16 %v336
        %v431 = vunpack.c.l.b16 %v337
        %v432 = vunpack.c.h.b16 %v337
        %v433 = vunpack.c.l.b16 %v338
        %v434 = vunpack.c.h.b16 %v338
        %v435 = vunpack.c.l.b16 %v339
        %v436 = vunpack.c.h.b16 %v339
        %v437 = vunpack.c.l.b16 %v340
        %v438 = vunpack.c.h.b16 %v340
        %v439 = vunpack.c.l.b16 %v341
        %v440 = vunpack.c.h.b16 %v341
        %v441 = vunpack.c.l.b16 %v342
        %v442 = vunpack.c.h.b16 %v342
        %v443 = vunpack.c.l.b16 %v343
        %v444 = vunpack.c.h.b16 %v343
        %v445 = vunpack.c.l.b16 %v344
        %v446 = vunpack.c.h.b16 %v344
        %v447 = vunpack.c.l.b16 %v345
        %v448 = vunpack.c.h.b16 %v345
        %v449 = vunpack.c.l.b16 %v346
        %v450 = vunpack.c.h.b16 %v346
        %v451 = vunpack.c.l.b16 %v347
        %v452 = vunpack.c.h.b16 %v347
        %v453 = vunpack.c.l.b16 %v348
        %v454 = vunpack.c.h.b16 %v348
        %v455 = vunpack.c.l.b16 %v349
        %v456 = vunpack.c.h.b16 %v349
        %v457 = vunpack.c.l.b16 %v350
        %v458 = vunpack.c.h.b16 %v350
        %v459 = vpack.c.b16 %v397, %v395
        %v460 = vpack.c.b16 %v398, %v396
        %v461 = vpack.c.b16 %v401, %v399
        %v462 = vpack.c.b16 %v402, %v400
        %v463 = vpack.c.b16 %v405, %v403
        %v464 = vpack.c.b16 %v406, %v404
        %v465 = vpack.c.b16 %v409, %v407
        %v466 = vpack.c.b16 %v410, %v408
        %v467 = vpack.c.b16 %v413, %v411
        %v468 = vpack.c.b16 %v414, %v412
        %v469 = vpack.c.b16 %v417, %v415
        %v470 = vpack.c.b16 %v418, %v416
        %v471 = vpack.c.b16 %v421, %v419
        %v472 = vpack.c.b16 %v422, %v420
        %v473 = vpack.c.b16 %v425, %v423
        %v474 = vpack.c.b16 %v426, %v424
        %v475 = vpack.c.b16 %v429, %v427
        %v476 = vpack.c.b16 %v430, %v428
        %v477 = vpack.c.b16 %v433, %v431
        %v478 = vpack.c.b16 %v434, %v432
        %v479 = vpack.c.b16 %v437, %v435
        %v480 = vpack.c.b16 %v438, %v436
        %v481 = vpack.c.b16 %v441, %v439
        %v482 = vpack.c.b16 %v442, %v440
        %v483 = vpack.c.b16 %v445, %v443
        %v484 = vpack.c.b16 %v446, %v444
        %v485 = vpack.c.b16 %v449, %v447
        %v486 = vpack.c.b16 %v450, %v448
        %v487 = vpack.c.b16 %v453, %v451
        %v488 = vpack.c.b16 %v454, %v452
        %v489 = vpack.c.b16 %v457, %v455
        %v490 = vpack.c.b16 %v458, %v456
        %523 = vmatprep.subr.bf16.mxu0 %v460
        %524 = vmatpush1.bf16.msra.mxu0 %v459
        %525 = vmatprep.subr.bf16.mxu0 %v462
        %526 = vmatpush1.bf16.msra.mxu0 %v461
        %527 = vmatprep.subr.bf16.mxu0 %v464
        %528 = vmatpush1.bf16.msra.mxu0 %v463
        %529 = vmatprep.subr.bf16.mxu0 %v466
        %530 = vmatpush1.bf16.msra.mxu0 %v465
        %531 = vmatprep.subr.bf16.mxu0 %v468
        %532 = vmatpush1.bf16.msra.mxu0 %v467
        %533 = vmatprep.subr.bf16.mxu0 %v470
        %534 = vmatpush1.bf16.msra.mxu0 %v469
        %535 = vmatprep.subr.bf16.mxu0 %v472
        %536 = vmatpush1.bf16.msra.mxu0 %v471
        %537 = vmatprep.subr.bf16.mxu0 %v474
        %538 = vmatpush1.bf16.msra.mxu0 %v473
        %539 = vmatprep.subr.bf16.mxu0 %v476
        %540 = vmatpush1.bf16.msra.mxu0 %v475
        %541 = vmatprep.subr.bf16.mxu0 %v478
        %542 = vmatpush1.bf16.msra.mxu0 %v477
        %543 = vmatprep.subr.bf16.mxu0 %v480
        %544 = vmatpush1.bf16.msra.mxu0 %v479
        %545 = vmatprep.subr.bf16.mxu0 %v482
        %546 = vmatpush1.bf16.msra.mxu0 %v481
        %547 = vmatprep.subr.bf16.mxu0 %v484
        %548 = vmatpush1.bf16.msra.mxu0 %v483
        %549 = vmatprep.subr.bf16.mxu0 %v486
        %550 = vmatpush1.bf16.msra.mxu0 %v485
        %551 = vmatprep.subr.bf16.mxu0 %v488
        %552 = vmatpush1.bf16.msra.mxu0 %v487
        %553 = vmatprep.subr.bf16.mxu0 %v490
        %554 = vmatpush1.bf16.msra.mxu0 %v489
        %555 = vmatprep.mubr.bf16.mxu0 %v318
        %556 = vmatmul.mubr.bf16.gmra.mrb[0].mxu0 %v317
        %v557 = vpop.f32.mrb[0].mxu0
        %v558 = vadd.f32 %v356, %v557
        %v559 = vpop.f32.mrb[0].mxu0
        %v560 = vadd.f32 %v360, %v559
        %v561 = vpop.f32.mrb[0].mxu0
        %v562 = vpop.f32.mrb[0].mxu0
        %563 = vdwg.mxu0
        %v564 = vmax.f32 %v558, 0.0
        %v565 = vmax.f32 %v560, 0.0
        %v566 = vadd.f32 %v315, %v564
        %v567 = vadd.f32 %v316, %v565
        %568 = vst [vmem:[#allocation2] sm:$0xff] %v566
        %569 = vst [vmem:[#allocation2 + $0x8] sm:$0xff] %v567
        %p570 = scmp.eq.s32.totalorder %s22, 3
        // Predicated region
        $region65: #{model_forward.1} parent=39 // pred_check
          %p571 = pneg %p570
        $region66: #{model_forward.1} parent=39 // pred_check_branch
          %573 = sbr.rel (%p571) target = $region68
        $region67: #{model_forward.1} parent=39 // pred_region
          %v574 = vpack.c.bf16 %v566, %v566
          %v575 = vpack.c.bf16 %v567, %v567
          %v576 = vld [vmem:[#allocation9] sm:$0xf]
          %v577 = vld [vmem:[#allocation9 + $0x4] sm:$0xf]
          %v578 = vld [vmem:[#allocation9 + $0x8] sm:$0xf]
          %v579 = vld [vmem:[#allocation9 + $0xc] sm:$0xf]
          %v580 = vld [vmem:[#allocation9 + $0x10] sm:$0xf]
          %v581 = vld [vmem:[#allocation9 + $0x14] sm:$0xf]
          %v582 = vld [vmem:[#allocation9 + $0x18] sm:$0xf]
          %v583 = vld [vmem:[#allocation9 + $0x1c] sm:$0xf]
          %v584 = vld [vmem:[#allocation9 + $0x20] sm:$0xf]
          %v585 = vld [vmem:[#allocation9 + $0x24] sm:$0xf]
          %v586 = vld [vmem:[#allocation9 + $0x28] sm:$0xf]
          %v587 = vld [vmem:[#allocation9 + $0x2c] sm:$0xf]
          %v588 = vld [vmem:[#allocation9 + $0x30] sm:$0xf]
          %v589 = vld [vmem:[#allocation9 + $0x34] sm:$0xf]
          %v590 = vld [vmem:[#allocation9 + $0x38] sm:$0xf]
          %v591 = vld [vmem:[#allocation9 + $0x3c] sm:$0xf]
          %v592 = vld [vmem:[#allocation9 + $0x40] sm:$0xf]
          %v593 = vld [vmem:[#allocation9 + $0x44] sm:$0xf]
          %v594 = vld [vmem:[#allocation9 + $0x48] sm:$0xf]
          %v595 = vld [vmem:[#allocation9 + $0x4c] sm:$0xf]
          %v596 = vld [vmem:[#allocation9 + $0x50] sm:$0xf]
          %v597 = vld [vmem:[#allocation9 + $0x54] sm:$0xf]
          %v598 = vld [vmem:[#allocation9 + $0x58] sm:$0xf]
          %v599 = vld [vmem:[#allocation9 + $0x5c] sm:$0xf]
          %v600 = vld [vmem:[#allocation9 + $0x60] sm:$0xf]
          %v601 = vld [vmem:[#allocation9 + $0x64] sm:$0xf]
          %v602 = vld [vmem:[#allocation9 + $0x68] sm:$0xf]
          %v603 = vld [vmem:[#allocation9 + $0x6c] sm:$0xf]
          %v604 = vld [vmem:[#allocation9 + $0x70] sm:$0xf]
          %v605 = vld [vmem:[#allocation9 + $0x74] sm:$0xf]
          %v606 = vld [vmem:[#allocation9 + $0x78] sm:$0xf]
          %v607 = vld [vmem:[#allocation9 + $0x7c] sm:$0xf]
          %v608 = vld [vmem:[#allocation11] sm:$0x1]
          %v610 = vlaneseq
          %v611 = vshrl.u32 %v610, 7
          %v612 = vsub.s32 0, %v611
          %v613 = vrot.slane %v608, %v612
          %v647 = vunpack.c.l.b16 %v576
          %v648 = vunpack.c.l.b16 %v577
          %v649 = vunpack.c.l.b16 %v578
          %v650 = vunpack.c.l.b16 %v579
          %v651 = vunpack.c.l.b16 %v580
          %v652 = vunpack.c.l.b16 %v581
          %v653 = vunpack.c.l.b16 %v582
          %v654 = vunpack.c.l.b16 %v583
          %v655 = vunpack.c.l.b16 %v584
          %v656 = vunpack.c.l.b16 %v585
          %v657 = vunpack.c.l.b16 %v586
          %v658 = vunpack.c.l.b16 %v587
          %v659 = vunpack.c.l.b16 %v588
          %v660 = vunpack.c.l.b16 %v589
          %v661 = vunpack.c.l.b16 %v590
          %v662 = vunpack.c.l.b16 %v591
          %v663 = vunpack.c.l.b16 %v592
          %v664 = vunpack.c.l.b16 %v593
          %v665 = vunpack.c.l.b16 %v594
          %v666 = vunpack.c.l.b16 %v595
          %v667 = vunpack.c.l.b16 %v596
          %v668 = vunpack.c.l.b16 %v597
          %v669 = vunpack.c.l.b16 %v598
          %v670 = vunpack.c.l.b16 %v599
          %v671 = vunpack.c.l.b16 %v600
          %v672 = vunpack.c.l.b16 %v601
          %v673 = vunpack.c.l.b16 %v602
          %v674 = vunpack.c.l.b16 %v603
          %v675 = vunpack.c.l.b16 %v604
          %v676 = vunpack.c.l.b16 %v605
          %v677 = vunpack.c.l.b16 %v606
          %v678 = vunpack.c.l.b16 %v607
          %v679 = vpack.c.b16 %v648, %v647
          %v680 = vpack.c.b16 %v650, %v649
          %v681 = vpack.c.b16 %v652, %v651
          %v682 = vpack.c.b16 %v654, %v653
          %v683 = vpack.c.b16 %v656, %v655
          %v684 = vpack.c.b16 %v658, %v657
          %v685 = vpack.c.b16 %v660, %v659
          %v686 = vpack.c.b16 %v662, %v661
          %v687 = vpack.c.b16 %v664, %v663
          %v688 = vpack.c.b16 %v666, %v665
          %v689 = vpack.c.b16 %v668, %v667
          %v690 = vpack.c.b16 %v670, %v669
          %v691 = vpack.c.b16 %v672, %v671
          %v692 = vpack.c.b16 %v674, %v673
          %v693 = vpack.c.b16 %v676, %v675
          %v694 = vpack.c.b16 %v678, %v677
          %711 = vmatprep.subr.bf16.mxu0 0
          %712 = vmatpush1.bf16.msra.mxu0 %v679
          %713 = vmatprep.subr.bf16.mxu0 0
          %714 = vmatpush1.bf16.msra.mxu0 %v680
          %715 = vmatprep.subr.bf16.mxu0 0
          %716 = vmatpush1.bf16.msra.mxu0 %v681
          %717 = vmatprep.subr.bf16.mxu0 0
          %718 = vmatpush1.bf16.msra.mxu0 %v682
          %719 = vmatprep.subr.bf16.mxu0 0
          %720 = vmatpush1.bf16.msra.mxu0 %v683
          %721 = vmatprep.subr.bf16.mxu0 0
          %722 = vmatpush1.bf16.msra.mxu0 %v684
          %723 = vmatprep.subr.bf16.mxu0 0
          %724 = vmatpush1.bf16.msra.mxu0 %v685
          %725 = vmatprep.subr.bf16.mxu0 0
          %726 = vmatpush1.bf16.msra.mxu0 %v686
          %727 = vmatprep.subr.bf16.mxu0 0
          %728 = vmatpush1.bf16.msra.mxu0 %v687
          %729 = vmatprep.subr.bf16.mxu0 0
          %730 = vmatpush1.bf16.msra.mxu0 %v688
          %731 = vmatprep.subr.bf16.mxu0 0
          %732 = vmatpush1.bf16.msra.mxu0 %v689
          %733 = vmatprep.subr.bf16.mxu0 0
          %734 = vmatpush1.bf16.msra.mxu0 %v690
          %735 = vmatprep.subr.bf16.mxu0 0
          %736 = vmatpush1.bf16.msra.mxu0 %v691
          %737 = vmatprep.subr.bf16.mxu0 0
          %738 = vmatpush1.bf16.msra.mxu0 %v692
          %739 = vmatprep.subr.bf16.mxu0 0
          %740 = vmatpush1.bf16.msra.mxu0 %v693
          %741 = vmatprep.subr.bf16.mxu0 0
          %742 = vmatpush1.bf16.msra.mxu0 %v694
          %743 = vmatprep.mubr.bf16.mxu0 %v575
          %744 = vmatmul.mubr.bf16.gmra.mrb[0].mxu0 %v574
          %v745 = vpop.f32.mrb[0].mxu0
          %v746 = vadd.f32 %v613, %v745
          %v747 = vpop.f32.mrb[0].mxu0
          %v748 = vpop.f32.mrb[0].mxu0
          %v749 = vpop.f32.mrb[0].mxu0
          %750 = vdwg.mxu0
          %751 = vst [vmem:[#allocation12] sm:$0xff] %v746
        $region68: #{model_forward.1} parent=39 // pred_fallthru
          _
        // Predicated region
        $region69: #{model_forward.1} parent=39 // pred_check
          %p752 = pneg %p150
        $region70: #{model_forward.1} parent=39 // pred_check_branch
          %754 = sbr.rel (%p752) target = $region72
        $region71: #{model_forward.1} parent=39 // pred_region
          %s756 = ssub.s32 128, 128
          %757 = vsyncadd [#allocation5], %s756
          %s759 = sshll.u32 [#allocation12], 4
          %s760 = int_to_ptr.vmem [resolvable:$true] %s759
          %762 = dma.vmem_to_hbm [thread:$0]  %s760, 128, %s5, [#allocation5]
        $region72: #{model_forward.1} parent=39 // pred_fallthru
          _
        // Predicated region
        $region73: #{model_forward.1} parent=39 // pred_check
          %p763 = pneg %p150
        $region74: #{model_forward.1} parent=39 // pred_check_branch
          %765 = sbr.rel (%p763) target = $region76
        $region75: #{model_forward.1} parent=39 // pred_region
          %766 = dma.done [#allocation5], 128
        $region76: #{model_forward.1} parent=39 // pred_fallthru
          _
      $region40: #{model_forward.1} parent=5 // pred_fallthru
        _
      %p767 = scmp.le.s32.totalorder 2, %s17
      // Predicated region
      $region77: #{model_forward.1} parent=5 // pred_check
        %p768 = pneg %p767
      $region78: #{model_forward.1} parent=5 // pred_check_branch
        %770 = sbr.rel (%p768) target = $region80
      $region79: #{model_forward.1} parent=5 // pred_region
        %s771 = ssub.s32 %s17, 2
      $region80: #{model_forward.1} parent=5 // pred_fallthru
        _
    $region6: #{model_forward.1} parent=1 // loop_footer
      %s21 = sadd.s32 1, %s17
    $region7: #{model_forward.1} parent=1 // loop_footer_branch
      %16 = sbr.rel target = $region3
    $region8: #{model_forward.1} parent=1 // loop_exit
      _
    %772 = vsyncpa [#allocation4], 1
    %s773 = scalar_lea.sflag [#allocation4], 1
    %774 = vsyncpa %s773, 1
    %775 = vsyncpa [#allocation7], 1
    %s776 = scalar_lea.sflag [#allocation7], 1
    %777 = vsyncpa %s776, 1
    %778 = vsyncpa [#allocation10], 1
    %779 = vsyncpa [#allocation5], 1
    %s780 = scalar_lea.sflag [#allocation5], 1
    %781 = vsyncpa %s780, 1

</llo_original>
